<compile_context>
chip_gen: v5e
topology: v5e:2x2
jax: 0.10.0
libtpu: 0.0.40
codegen_flags: <defaults>
</compile_context>

<pallas_src>
import functools

import jax
import jax.numpy as jnp
import numpy as np
from jax.experimental import pallas as pl
from jax.experimental.pallas import tpu as pltpu

KS = 3                 # neighbourhood kernel_size
PAD = (KS - 1) // 2    # 'auto' (same) zero padding for odd kernel, stride=1


def _mca_kernel(x_ref, w_all_ref, wo_ref, bo_ref, mask_ref, o_ref, *, shifts):
    """One batch element of MultiConvAttention (single head, stride=1, zero pad).

    Layout: channel-first with flattened spatial axis (C, H*W), lane-dense.
    """
    ckv = w_all_ref.shape[0] // 2
    n_taps = len(shifts)

    x = x_ref[0].astype(jnp.float32)                                    # (Cin, HW)

    # ---- fused QKV projection (single MXU push).  Row layout of w_all:
    #        rows [0, Cout)            -> Wq   (rest of the first tile is zeros)
    #        rows [ckv, ckv+Cout)      -> Wk
    #        rows [ckv+Cout, ckv+2C)   -> Wv
    r = jnp.dot(w_all_ref[...].astype(jnp.float32), x,
                preferred_element_type=jnp.float32)                     # (2*ckv, HW)
    qpad = r[:ckv]           # (ckv, HW): q in rows [0,Cout), zeros elsewhere (tile-aligned)
    kv = r[ckv:]             # (ckv, HW): k rows then v rows, packed in one sublane tile

    # ---- pass 1: per-tap masked logits via one packed k/v lane roll per tap ----------
    # Masked (out-of-bounds) taps get logit 0, exactly like zero-padded keys in the
    # reference (do NOT use -inf).  qpad's zero rows nullify the v rows in the reduce.
    logits = []
    for t in range(n_taps):
        sh = shifts[t]
        kv_s = kv if sh == 0 else pltpu.roll(kv, sh, axis=1)
        lg = jnp.sum(qpad * kv_s, axis=0, keepdims=True)                # (1, HW)
        logits.append(lg * mask_ref[t])

    mx = logits[0]
    for lg in logits[1:]:
        mx = jnp.maximum(mx, lg)

    # ---- pass 2 (fused): exp + denominator + weighted value accumulation -------------
    denom = jnp.zeros_like(mx)                                          # (1, HW)
    acc = jnp.zeros_like(kv)          # full-tile accumulator; v rows hold the answer
    for t in range(n_taps):
        sh = shifts[t]
        kv_s = kv if sh == 0 else pltpu.roll(kv, sh, axis=1)
        e = jnp.exp(logits[t] - mx)                                     # (1, HW)
        denom = denom + e
        acc = acc + (e * mask_ref[t]) * kv_s     # zero-padded values contribute 0

    out = acc * pl.reciprocal(denom, approx=True)                       # (ckv, HW)

    # ---- output projection: Wo_pad has Wo in columns [Cout, 2*Cout) so the MXU picks
    #      the v rows of the packed accumulator (no unaligned sublane slice).
    y = jnp.dot(wo_ref[...].astype(jnp.float32), out,
                preferred_element_type=jnp.float32) + bo_ref[...]
    o_ref[...] = y[None].astype(o_ref.dtype)                            # lane-dense store


def multi_conv_attention(x_nchw, w_qkv, w_out, b_out):
    """MultiConvAttention forward.

    x_nchw : (B, Cin, H, W)   input, NCHW (PyTorch convention)
    w_qkv  : (3*Cout, Cin)    ConvAttention.linear.weight (no bias)
    w_out  : (Cout, Cout)     MultiConvAttention.linear.weight
    b_out  : (Cout,)          MultiConvAttention.linear.bias
    returns  (B, Cout, H, W)
    """
    B, Cin, H, W = x_nchw.shape
    Cout = w_out.shape[0]
    HW = H * W
    assert H >= KS and W >= KS, "spatial dims must be >= kernel_size"

    taps = [(ey, ex) for ey in range(-PAD, PAD + 1) for ex in range(-PAD, PAD + 1)]
    shifts = tuple((ey * W + ex) % HW for ey, ex in taps)
    n_taps = len(taps)

    # Channel-first flattened layout: pure reshape, no HBM transpose passes.
    x = x_nchw.reshape(B, Cin, HW)

    # k/v are packed into one sublane-tile-aligned block of ckv rows.
    ckv = -(-2 * Cout // 8) * 8
    wq = w_qkv[:Cout]
    wkv = w_qkv[Cout:3 * Cout]
    w_all = jnp.concatenate(
        [wq, jnp.zeros((ckv - Cout, Cin), w_qkv.dtype),
         wkv, jnp.zeros((ckv - 2 * Cout, Cin), w_qkv.dtype)], axis=0)    # (2*ckv, Cin)
    wo_pad = jnp.concatenate(
        [jnp.zeros((Cout, Cout), w_out.dtype), w_out,
         jnp.zeros((Cout, ckv - 2 * Cout), w_out.dtype)], axis=1)        # (Cout, ckv)
    bo = b_out.reshape(Cout, 1)

    # Static zero-padding masks.  pltpu.roll follows np.roll (source = p - shift), so the
    # neighbour delivered at (r, c) for tap (ey, ex) is (r - ey, c - ex); it is valid iff
    # that position lies inside the image, otherwise the reference's zero padding applies.
    rr = np.arange(H).reshape(H, 1)
    cc = np.arange(W).reshape(1, W)
    masks_np = np.stack(
        [((rr - ey >= 0) & (rr - ey < H) & (cc - ex >= 0) & (cc - ex < W))
         .astype(np.float32).reshape(1, HW) for ey, ex in taps], axis=0)  # (9, 1, HW)
    masks = jnp.asarray(masks_np)

    kernel = functools.partial(_mca_kernel, shifts=shifts)
    out = pl.pallas_call(
        kernel,
        out_shape=jax.ShapeDtypeStruct((B, Cout, HW), x_nchw.dtype),
        grid_spec=pltpu.PrefetchScalarGridSpec(
            num_scalar_prefetch=0,
            grid=(B,),                                        # one batch element per grid step
            in_specs=[
                pl.BlockSpec((1, Cin, HW), lambda b: (b, 0, 0)),       # x (channel-first, flat)
                pl.BlockSpec((2 * ckv, Cin), lambda b: (0, 0)),        # fused/padded QKV weight
                pl.BlockSpec((Cout, ckv), lambda b: (0, 0)),           # padded output weight
                pl.BlockSpec((Cout, 1), lambda b: (0, 0)),             # bias
                pl.BlockSpec((n_taps, 1, HW), lambda b: (0, 0, 0)),    # precomputed tap masks
            ],
            out_specs=pl.BlockSpec((1, Cout, HW), lambda b: (b, 0, 0)),
        ),
        compiler_params=pltpu.CompilerParams(
            dimension_semantics=("parallel",)),               # B>=2 keeps both v7x TCs busy
    )(x, w_all, wo_pad, bo, masks)

    return out.reshape(B, Cout, H, W)


def _reference(x_nchw, w_qkv, w_out, b_out):
    """Pure-JAX reference of the same forward (for a correctness check)."""
    B, Cin, H, W = x_nchw.shape
    Cout = w_out.shape[0]
    x = jnp.transpose(x_nchw, (0, 2, 3, 1))
    qkv = x @ w_qkv.T
    q, k, v = qkv[..., :Cout], qkv[..., Cout:2 * Cout], qkv[..., 2 * Cout:]
    kp = jnp.pad(k, ((0, 0), (PAD, PAD), (PAD, PAD), (0, 0)))
    vp = jnp.pad(v, ((0, 0), (PAD, PAD), (PAD, PAD), (0, 0)))
    taps = [(dy, dx) for dy in range(KS) for dx in range(KS)]
    logits = jnp.stack(
        [jnp.sum(q * kp[:, dy:dy + H, dx:dx + W, :], axis=-1) for dy, dx in taps],
        axis=-1)
    attn = jax.nn.softmax(logits, axis=-1)
    out = jnp.zeros((B, H, W, Cout), jnp.float32)
    for t, (dy, dx) in enumerate(taps):
        out = out + attn[..., t:t + 1] * vp[:, dy:dy + H, dx:dx + W, :]
    y = out @ w_out.T + b_out
    return jnp.transpose(y, (0, 3, 1, 2))


if __name__ == "__main__":
    # Small shapes: nb_heads=2, in_channels=4, out_channels=4 (multiple of nb_heads),
    # batch=2, spatial=16x16.  (As in the reference code, only one head module exists.)
    nb_heads, Cin, Cout = 2, 4, 4
    B, H, W = 2, 16, 16

    key = jax.random.PRNGKey(0)
    k1, k2, k3, k4 = jax.random.split(key, 4)
    x = jax.random.normal(k1, (B, Cin, H, W), dtype=jnp.float32)
    # Deterministic synthetic "Linear" weights (uniform, 1/sqrt(fan_in) scale).
    w_qkv = jax.random.uniform(k2, (3 * Cout, Cin), jnp.float32, -1.0, 1.0) / np.sqrt(Cin)
    w_out = jax.random.uniform(k3, (Cout, Cout), jnp.float32, -1.0, 1.0) / np.sqrt(Cout)
    b_out = jax.random.uniform(k4, (Cout,), jnp.float32, -1.0, 1.0) / np.sqrt(Cout)

    y = jax.block_until_ready(multi_conv_attention(x, w_qkv, w_out, b_out))
    assert y.shape == (B, Cout, H, W), y.shape

    y_ref = _reference(x, w_qkv, w_out, b_out)
    np.testing.assert_allclose(np.asarray(y), np.asarray(y_ref), rtol=2e-2, atol=2e-2)

    print("KERNEL_OK")
</pallas_src>

<mosaic_0001>
module attributes {stable_mosaic.version = 11 : i64} {
  func.func @_mca_kernel(%arg0: i32, %arg1: memref<1x4x256xf32, #tpu.memory_space<vmem>>, %arg2: memref<16x4xf32, #tpu.memory_space<vmem>>, %arg3: memref<4x8xf32, #tpu.memory_space<vmem>>, %arg4: memref<4x1xf32, #tpu.memory_space<vmem>>, %arg5: memref<9x1x256xf32, #tpu.memory_space<vmem>>, %arg6: memref<1x4x256xf32, #tpu.memory_space<vmem>>) attributes {dimension_semantics = [#tpu.dimension_semantics<parallel>], iteration_bounds = array<i64: 2>, scalar_prefetch = 0 : i64, scratch_operands = 0 : i64, tpu.core_type = #tpu.core_type<tc>, window_params = [{transform_indices = @transform_0, window_bounds = array<i64: 1, 4, 256>}, {pipeline_mode = #tpu.pipeline_mode<synchronous>, transform_indices = @transform_1, window_bounds = array<i64: 16, 4>}, {pipeline_mode = #tpu.pipeline_mode<synchronous>, transform_indices = @transform_2, window_bounds = array<i64: 4, 8>}, {pipeline_mode = #tpu.pipeline_mode<synchronous>, transform_indices = @transform_3, window_bounds = array<i64: 4, 1>}, {pipeline_mode = #tpu.pipeline_mode<synchronous>, transform_indices = @transform_4, window_bounds = array<i64: 9, 1, 256>}, {transform_indices = @transform_5, window_bounds = array<i64: 1, 4, 256>}]} {
    %c0 = arith.constant 0 : index
    %c0_0 = arith.constant 0 : index
    %c0_1 = arith.constant 0 : index
    %0 = vector.load %arg1[%c0, %c0_0, %c0_1] : memref<1x4x256xf32, #tpu.memory_space<vmem>>, vector<1x4x256xf32>
    %1 = vector.shape_cast %0 : vector<1x4x256xf32> to vector<4x256xf32>
    %c0_2 = arith.constant 0 : index
    %c0_3 = arith.constant 0 : index
    %2 = vector.load %arg2[%c0_2, %c0_3] : memref<16x4xf32, #tpu.memory_space<vmem>>, vector<16x4xf32>
    %cst = arith.constant dense<0.000000e+00> : vector<16x256xf32>
    %3 = tpu.matmul %2, %1, %cst {dimension_numbers = #tpu.dot_dimension_numbers<[1], [0], [0], [1], [0, 0, 1, 1], [], []>} : vector<16x4xf32>, vector<4x256xf32>, vector<16x256xf32> -> vector<16x256xf32>
    %4 = vector.extract_strided_slice %3 {offsets = [0, 0], sizes = [8, 256], strides = [1, 1]} : vector<16x256xf32> to vector<8x256xf32>
    %5 = vector.extract_strided_slice %3 {offsets = [8, 0], sizes = [8, 256], strides = [1, 1]} : vector<16x256xf32> to vector<8x256xf32>
    %c239_i32 = arith.constant 239 : i32
    %6 = tpu.dynamic_rotate %5 by %c239_i32 dim 1 : vector<8x256xf32>, i32 -> vector<8x256xf32>
    %7 = arith.mulf %4, %6 : vector<8x256xf32>
    %cst_4 = arith.constant dense<0.000000e+00> : vector<256xf32>
    %8 = vector.multi_reduction <add>, %7, %cst_4 [0] : vector<8x256xf32> to vector<256xf32>
    %9 = vector.shape_cast %8 : vector<256xf32> to vector<1x256xf32>
    %c0_5 = arith.constant 0 : index
    %c0_6 = arith.constant 0 : index
    %c0_7 = arith.constant 0 : index
    %10 = vector.load %arg5[%c0_5, %c0_6, %c0_7] : memref<9x1x256xf32, #tpu.memory_space<vmem>>, vector<1x1x256xf32>
    %11 = vector.shape_cast %10 : vector<1x1x256xf32> to vector<1x256xf32>
    %12 = arith.mulf %9, %11 : vector<1x256xf32>
    %c240_i32 = arith.constant 240 : i32
    %13 = tpu.dynamic_rotate %5 by %c240_i32 dim 1 : vector<8x256xf32>, i32 -> vector<8x256xf32>
    %14 = arith.mulf %4, %13 : vector<8x256xf32>
    %cst_8 = arith.constant dense<0.000000e+00> : vector<256xf32>
    %15 = vector.multi_reduction <add>, %14, %cst_8 [0] : vector<8x256xf32> to vector<256xf32>
    %16 = vector.shape_cast %15 : vector<256xf32> to vector<1x256xf32>
    %c1 = arith.constant 1 : index
    %c0_9 = arith.constant 0 : index
    %c0_10 = arith.constant 0 : index
    %17 = vector.load %arg5[%c1, %c0_9, %c0_10] : memref<9x1x256xf32, #tpu.memory_space<vmem>>, vector<1x1x256xf32>
    %18 = vector.shape_cast %17 : vector<1x1x256xf32> to vector<1x256xf32>
    %19 = arith.mulf %16, %18 : vector<1x256xf32>
    %c241_i32 = arith.constant 241 : i32
    %20 = tpu.dynamic_rotate %5 by %c241_i32 dim 1 : vector<8x256xf32>, i32 -> vector<8x256xf32>
    %21 = arith.mulf %4, %20 : vector<8x256xf32>
    %cst_11 = arith.constant dense<0.000000e+00> : vector<256xf32>
    %22 = vector.multi_reduction <add>, %21, %cst_11 [0] : vector<8x256xf32> to vector<256xf32>
    %23 = vector.shape_cast %22 : vector<256xf32> to vector<1x256xf32>
    %c2 = arith.constant 2 : index
    %c0_12 = arith.constant 0 : index
    %c0_13 = arith.constant 0 : index
    %24 = vector.load %arg5[%c2, %c0_12, %c0_13] : memref<9x1x256xf32, #tpu.memory_space<vmem>>, vector<1x1x256xf32>
    %25 = vector.shape_cast %24 : vector<1x1x256xf32> to vector<1x256xf32>
    %26 = arith.mulf %23, %25 : vector<1x256xf32>
    %c255_i32 = arith.constant 255 : i32
    %27 = tpu.dynamic_rotate %5 by %c255_i32 dim 1 : vector<8x256xf32>, i32 -> vector<8x256xf32>
    %28 = arith.mulf %4, %27 : vector<8x256xf32>
    %cst_14 = arith.constant dense<0.000000e+00> : vector<256xf32>
    %29 = vector.multi_reduction <add>, %28, %cst_14 [0] : vector<8x256xf32> to vector<256xf32>
    %30 = vector.shape_cast %29 : vector<256xf32> to vector<1x256xf32>
    %c3 = arith.constant 3 : index
    %c0_15 = arith.constant 0 : index
    %c0_16 = arith.constant 0 : index
    %31 = vector.load %arg5[%c3, %c0_15, %c0_16] : memref<9x1x256xf32, #tpu.memory_space<vmem>>, vector<1x1x256xf32>
    %32 = vector.shape_cast %31 : vector<1x1x256xf32> to vector<1x256xf32>
    %33 = arith.mulf %30, %32 : vector<1x256xf32>
    %34 = arith.mulf %4, %5 : vector<8x256xf32>
    %cst_17 = arith.constant dense<0.000000e+00> : vector<256xf32>
    %35 = vector.multi_reduction <add>, %34, %cst_17 [0] : vector<8x256xf32> to vector<256xf32>
    %36 = vector.shape_cast %35 : vector<256xf32> to vector<1x256xf32>
    %c4 = arith.constant 4 : index
    %c0_18 = arith.constant 0 : index
    %c0_19 = arith.constant 0 : index
    %37 = vector.load %arg5[%c4, %c0_18, %c0_19] : memref<9x1x256xf32, #tpu.memory_space<vmem>>, vector<1x1x256xf32>
    %38 = vector.shape_cast %37 : vector<1x1x256xf32> to vector<1x256xf32>
    %39 = arith.mulf %36, %38 : vector<1x256xf32>
    %c1_i32 = arith.constant 1 : i32
    %40 = tpu.dynamic_rotate %5 by %c1_i32 dim 1 : vector<8x256xf32>, i32 -> vector<8x256xf32>
    %41 = arith.mulf %4, %40 : vector<8x256xf32>
    %cst_20 = arith.constant dense<0.000000e+00> : vector<256xf32>
    %42 = vector.multi_reduction <add>, %41, %cst_20 [0] : vector<8x256xf32> to vector<256xf32>
    %43 = vector.shape_cast %42 : vector<256xf32> to vector<1x256xf32>
    %c5 = arith.constant 5 : index
    %c0_21 = arith.constant 0 : index
    %c0_22 = arith.constant 0 : index
    %44 = vector.load %arg5[%c5, %c0_21, %c0_22] : memref<9x1x256xf32, #tpu.memory_space<vmem>>, vector<1x1x256xf32>
    %45 = vector.shape_cast %44 : vector<1x1x256xf32> to vector<1x256xf32>
    %46 = arith.mulf %43, %45 : vector<1x256xf32>
    %c15_i32 = arith.constant 15 : i32
    %47 = tpu.dynamic_rotate %5 by %c15_i32 dim 1 : vector<8x256xf32>, i32 -> vector<8x256xf32>
    %48 = arith.mulf %4, %47 : vector<8x256xf32>
    %cst_23 = arith.constant dense<0.000000e+00> : vector<256xf32>
    %49 = vector.multi_reduction <add>, %48, %cst_23 [0] : vector<8x256xf32> to vector<256xf32>
    %50 = vector.shape_cast %49 : vector<256xf32> to vector<1x256xf32>
    %c6 = arith.constant 6 : index
    %c0_24 = arith.constant 0 : index
    %c0_25 = arith.constant 0 : index
    %51 = vector.load %arg5[%c6, %c0_24, %c0_25] : memref<9x1x256xf32, #tpu.memory_space<vmem>>, vector<1x1x256xf32>
    %52 = vector.shape_cast %51 : vector<1x1x256xf32> to vector<1x256xf32>
    %53 = arith.mulf %50, %52 : vector<1x256xf32>
    %c16_i32 = arith.constant 16 : i32
    %54 = tpu.dynamic_rotate %5 by %c16_i32 dim 1 : vector<8x256xf32>, i32 -> vector<8x256xf32>
    %55 = arith.mulf %4, %54 : vector<8x256xf32>
    %cst_26 = arith.constant dense<0.000000e+00> : vector<256xf32>
    %56 = vector.multi_reduction <add>, %55, %cst_26 [0] : vector<8x256xf32> to vector<256xf32>
    %57 = vector.shape_cast %56 : vector<256xf32> to vector<1x256xf32>
    %c7 = arith.constant 7 : index
    %c0_27 = arith.constant 0 : index
    %c0_28 = arith.constant 0 : index
    %58 = vector.load %arg5[%c7, %c0_27, %c0_28] : memref<9x1x256xf32, #tpu.memory_space<vmem>>, vector<1x1x256xf32>
    %59 = vector.shape_cast %58 : vector<1x1x256xf32> to vector<1x256xf32>
    %60 = arith.mulf %57, %59 : vector<1x256xf32>
    %c17_i32 = arith.constant 17 : i32
    %61 = tpu.dynamic_rotate %5 by %c17_i32 dim 1 : vector<8x256xf32>, i32 -> vector<8x256xf32>
    %62 = arith.mulf %4, %61 : vector<8x256xf32>
    %cst_29 = arith.constant dense<0.000000e+00> : vector<256xf32>
    %63 = vector.multi_reduction <add>, %62, %cst_29 [0] : vector<8x256xf32> to vector<256xf32>
    %64 = vector.shape_cast %63 : vector<256xf32> to vector<1x256xf32>
    %c8 = arith.constant 8 : index
    %c0_30 = arith.constant 0 : index
    %c0_31 = arith.constant 0 : index
    %65 = vector.load %arg5[%c8, %c0_30, %c0_31] : memref<9x1x256xf32, #tpu.memory_space<vmem>>, vector<1x1x256xf32>
    %66 = vector.shape_cast %65 : vector<1x1x256xf32> to vector<1x256xf32>
    %67 = arith.mulf %64, %66 : vector<1x256xf32>
    %68 = arith.maximumf %12, %19 : vector<1x256xf32>
    %69 = arith.maximumf %68, %26 : vector<1x256xf32>
    %70 = arith.maximumf %69, %33 : vector<1x256xf32>
    %71 = arith.maximumf %70, %39 : vector<1x256xf32>
    %72 = arith.maximumf %71, %46 : vector<1x256xf32>
    %73 = arith.maximumf %72, %53 : vector<1x256xf32>
    %74 = arith.maximumf %73, %60 : vector<1x256xf32>
    %75 = arith.maximumf %74, %67 : vector<1x256xf32>
    %cst_32 = arith.constant 0.000000e+00 : f32
    %76 = vector.broadcast %cst_32 : f32 to vector<1x256xf32>
    %cst_33 = arith.constant 0.000000e+00 : f32
    %77 = vector.broadcast %cst_33 : f32 to vector<8x256xf32>
    %c239_i32_34 = arith.constant 239 : i32
    %78 = tpu.dynamic_rotate %5 by %c239_i32_34 dim 1 : vector<8x256xf32>, i32 -> vector<8x256xf32>
    %79 = arith.subf %12, %75 : vector<1x256xf32>
    %80 = math.exp %79 : vector<1x256xf32>
    %81 = arith.addf %76, %80 : vector<1x256xf32>
    %c0_35 = arith.constant 0 : index
    %c0_36 = arith.constant 0 : index
    %c0_37 = arith.constant 0 : index
    %82 = vector.load %arg5[%c0_35, %c0_36, %c0_37] : memref<9x1x256xf32, #tpu.memory_space<vmem>>, vector<1x1x256xf32>
    %83 = vector.shape_cast %82 : vector<1x1x256xf32> to vector<1x256xf32>
    %84 = arith.mulf %80, %83 : vector<1x256xf32>
    %85 = vector.broadcast %84 : vector<1x256xf32> to vector<8x256xf32>
    %86 = arith.mulf %85, %78 : vector<8x256xf32>
    %87 = arith.addf %77, %86 : vector<8x256xf32>
    %c240_i32_38 = arith.constant 240 : i32
    %88 = tpu.dynamic_rotate %5 by %c240_i32_38 dim 1 : vector<8x256xf32>, i32 -> vector<8x256xf32>
    %89 = arith.subf %19, %75 : vector<1x256xf32>
    %90 = math.exp %89 : vector<1x256xf32>
    %91 = arith.addf %81, %90 : vector<1x256xf32>
    %c1_39 = arith.constant 1 : index
    %c0_40 = arith.constant 0 : index
    %c0_41 = arith.constant 0 : index
    %92 = vector.load %arg5[%c1_39, %c0_40, %c0_41] : memref<9x1x256xf32, #tpu.memory_space<vmem>>, vector<1x1x256xf32>
    %93 = vector.shape_cast %92 : vector<1x1x256xf32> to vector<1x256xf32>
    %94 = arith.mulf %90, %93 : vector<1x256xf32>
    %95 = vector.broadcast %94 : vector<1x256xf32> to vector<8x256xf32>
    %96 = arith.mulf %95, %88 : vector<8x256xf32>
    %97 = arith.addf %87, %96 : vector<8x256xf32>
    %c241_i32_42 = arith.constant 241 : i32
    %98 = tpu.dynamic_rotate %5 by %c241_i32_42 dim 1 : vector<8x256xf32>, i32 -> vector<8x256xf32>
    %99 = arith.subf %26, %75 : vector<1x256xf32>
    %100 = math.exp %99 : vector<1x256xf32>
    %101 = arith.addf %91, %100 : vector<1x256xf32>
    %c2_43 = arith.constant 2 : index
    %c0_44 = arith.constant 0 : index
    %c0_45 = arith.constant 0 : index
    %102 = vector.load %arg5[%c2_43, %c0_44, %c0_45] : memref<9x1x256xf32, #tpu.memory_space<vmem>>, vector<1x1x256xf32>
    %103 = vector.shape_cast %102 : vector<1x1x256xf32> to vector<1x256xf32>
    %104 = arith.mulf %100, %103 : vector<1x256xf32>
    %105 = vector.broadcast %104 : vector<1x256xf32> to vector<8x256xf32>
    %106 = arith.mulf %105, %98 : vector<8x256xf32>
    %107 = arith.addf %97, %106 : vector<8x256xf32>
    %c255_i32_46 = arith.constant 255 : i32
    %108 = tpu.dynamic_rotate %5 by %c255_i32_46 dim 1 : vector<8x256xf32>, i32 -> vector<8x256xf32>
    %109 = arith.subf %33, %75 : vector<1x256xf32>
    %110 = math.exp %109 : vector<1x256xf32>
    %111 = arith.addf %101, %110 : vector<1x256xf32>
    %c3_47 = arith.constant 3 : index
    %c0_48 = arith.constant 0 : index
    %c0_49 = arith.constant 0 : index
    %112 = vector.load %arg5[%c3_47, %c0_48, %c0_49] : memref<9x1x256xf32, #tpu.memory_space<vmem>>, vector<1x1x256xf32>
    %113 = vector.shape_cast %112 : vector<1x1x256xf32> to vector<1x256xf32>
    %114 = arith.mulf %110, %113 : vector<1x256xf32>
    %115 = vector.broadcast %114 : vector<1x256xf32> to vector<8x256xf32>
    %116 = arith.mulf %115, %108 : vector<8x256xf32>
    %117 = arith.addf %107, %116 : vector<8x256xf32>
    %118 = arith.subf %39, %75 : vector<1x256xf32>
    %119 = math.exp %118 : vector<1x256xf32>
    %120 = arith.addf %111, %119 : vector<1x256xf32>
    %c4_50 = arith.constant 4 : index
    %c0_51 = arith.constant 0 : index
    %c0_52 = arith.constant 0 : index
    %121 = vector.load %arg5[%c4_50, %c0_51, %c0_52] : memref<9x1x256xf32, #tpu.memory_space<vmem>>, vector<1x1x256xf32>
    %122 = vector.shape_cast %121 : vector<1x1x256xf32> to vector<1x256xf32>
    %123 = arith.mulf %119, %122 : vector<1x256xf32>
    %124 = vector.broadcast %123 : vector<1x256xf32> to vector<8x256xf32>
    %125 = arith.mulf %124, %5 : vector<8x256xf32>
    %126 = arith.addf %117, %125 : vector<8x256xf32>
    %c1_i32_53 = arith.constant 1 : i32
    %127 = tpu.dynamic_rotate %5 by %c1_i32_53 dim 1 : vector<8x256xf32>, i32 -> vector<8x256xf32>
    %128 = arith.subf %46, %75 : vector<1x256xf32>
    %129 = math.exp %128 : vector<1x256xf32>
    %130 = arith.addf %120, %129 : vector<1x256xf32>
    %c5_54 = arith.constant 5 : index
    %c0_55 = arith.constant 0 : index
    %c0_56 = arith.constant 0 : index
    %131 = vector.load %arg5[%c5_54, %c0_55, %c0_56] : memref<9x1x256xf32, #tpu.memory_space<vmem>>, vector<1x1x256xf32>
    %132 = vector.shape_cast %131 : vector<1x1x256xf32> to vector<1x256xf32>
    %133 = arith.mulf %129, %132 : vector<1x256xf32>
    %134 = vector.broadcast %133 : vector<1x256xf32> to vector<8x256xf32>
    %135 = arith.mulf %134, %127 : vector<8x256xf32>
    %136 = arith.addf %126, %135 : vector<8x256xf32>
    %c15_i32_57 = arith.constant 15 : i32
    %137 = tpu.dynamic_rotate %5 by %c15_i32_57 dim 1 : vector<8x256xf32>, i32 -> vector<8x256xf32>
    %138 = arith.subf %53, %75 : vector<1x256xf32>
    %139 = math.exp %138 : vector<1x256xf32>
    %140 = arith.addf %130, %139 : vector<1x256xf32>
    %c6_58 = arith.constant 6 : index
    %c0_59 = arith.constant 0 : index
    %c0_60 = arith.constant 0 : index
    %141 = vector.load %arg5[%c6_58, %c0_59, %c0_60] : memref<9x1x256xf32, #tpu.memory_space<vmem>>, vector<1x1x256xf32>
    %142 = vector.shape_cast %141 : vector<1x1x256xf32> to vector<1x256xf32>
    %143 = arith.mulf %139, %142 : vector<1x256xf32>
    %144 = vector.broadcast %143 : vector<1x256xf32> to vector<8x256xf32>
    %145 = arith.mulf %144, %137 : vector<8x256xf32>
    %146 = arith.addf %136, %145 : vector<8x256xf32>
    %c16_i32_61 = arith.constant 16 : i32
    %147 = tpu.dynamic_rotate %5 by %c16_i32_61 dim 1 : vector<8x256xf32>, i32 -> vector<8x256xf32>
    %148 = arith.subf %60, %75 : vector<1x256xf32>
    %149 = math.exp %148 : vector<1x256xf32>
    %150 = arith.addf %140, %149 : vector<1x256xf32>
    %c7_62 = arith.constant 7 : index
    %c0_63 = arith.constant 0 : index
    %c0_64 = arith.constant 0 : index
    %151 = vector.load %arg5[%c7_62, %c0_63, %c0_64] : memref<9x1x256xf32, #tpu.memory_space<vmem>>, vector<1x1x256xf32>
    %152 = vector.shape_cast %151 : vector<1x1x256xf32> to vector<1x256xf32>
    %153 = arith.mulf %149, %152 : vector<1x256xf32>
    %154 = vector.broadcast %153 : vector<1x256xf32> to vector<8x256xf32>
    %155 = arith.mulf %154, %147 : vector<8x256xf32>
    %156 = arith.addf %146, %155 : vector<8x256xf32>
    %c17_i32_65 = arith.constant 17 : i32
    %157 = tpu.dynamic_rotate %5 by %c17_i32_65 dim 1 : vector<8x256xf32>, i32 -> vector<8x256xf32>
    %158 = arith.subf %67, %75 : vector<1x256xf32>
    %159 = math.exp %158 : vector<1x256xf32>
    %160 = arith.addf %150, %159 : vector<1x256xf32>
    %c8_66 = arith.constant 8 : index
    %c0_67 = arith.constant 0 : index
    %c0_68 = arith.constant 0 : index
    %161 = vector.load %arg5[%c8_66, %c0_67, %c0_68] : memref<9x1x256xf32, #tpu.memory_space<vmem>>, vector<1x1x256xf32>
    %162 = vector.shape_cast %161 : vector<1x1x256xf32> to vector<1x256xf32>
    %163 = arith.mulf %159, %162 : vector<1x256xf32>
    %164 = vector.broadcast %163 : vector<1x256xf32> to vector<8x256xf32>
    %165 = arith.mulf %164, %157 : vector<8x256xf32>
    %166 = arith.addf %156, %165 : vector<8x256xf32>
    %167 = tpu.reciprocal %160 {approx = true} : vector<1x256xf32> -> vector<1x256xf32>
    %168 = vector.broadcast %167 : vector<1x256xf32> to vector<8x256xf32>
    %169 = arith.mulf %166, %168 : vector<8x256xf32>
    %c0_69 = arith.constant 0 : index
    %c0_70 = arith.constant 0 : index
    %170 = vector.load %arg3[%c0_69, %c0_70] : memref<4x8xf32, #tpu.memory_space<vmem>>, vector<4x8xf32>
    %cst_71 = arith.constant dense<0.000000e+00> : vector<4x256xf32>
    %171 = tpu.matmul %170, %169, %cst_71 {dimension_numbers = #tpu.dot_dimension_numbers<[1], [0], [0], [1], [0, 0, 1, 1], [], []>} : vector<4x8xf32>, vector<8x256xf32>, vector<4x256xf32> -> vector<4x256xf32>
    %c0_72 = arith.constant 0 : index
    %c0_73 = arith.constant 0 : index
    %172 = vector.load %arg4[%c0_72, %c0_73] : memref<4x1xf32, #tpu.memory_space<vmem>>, vector<4x1xf32>
    %173 = vector.broadcast %172 : vector<4x1xf32> to vector<4x256xf32>
    %174 = arith.addf %171, %173 : vector<4x256xf32>
    %175 = vector.shape_cast %174 : vector<4x256xf32> to vector<1x4x256xf32>
    %c0_74 = arith.constant 0 : index
    %c0_75 = arith.constant 0 : index
    %c0_76 = arith.constant 0 : index
    %176 = vector.load %arg6[%c0_74, %c0_75, %c0_76] : memref<1x4x256xf32, #tpu.memory_space<vmem>>, vector<1x4x256xf32>
    tpu.vector_store %arg6[%c0_74, %c0_75, %c0_76], %175 {strides = array<i32>} : memref<1x4x256xf32, #tpu.memory_space<vmem>>, vector<1x4x256xf32>,
    return
  }
  func.func @transform_0(%arg0: i32) -> (i32, i32, i32) {
    %c0_i32 = arith.constant 0 : i32
    %c0_i32_0 = arith.constant 0 : i32
    %c0_i32_1 = arith.constant 0 : i32
    return %arg0, %c0_i32, %c0_i32_0 : i32, i32, i32
  }
  func.func @transform_1(%arg0: i32) -> (i32, i32) {
    %c0_i32 = arith.constant 0 : i32
    %c0_i32_0 = arith.constant 0 : i32
    %c0_i32_1 = arith.constant 0 : i32
    return %c0_i32, %c0_i32_0 : i32, i32
  }
  func.func @transform_2(%arg0: i32) -> (i32, i32) {
    %c0_i32 = arith.constant 0 : i32
    %c0_i32_0 = arith.constant 0 : i32
    %c0_i32_1 = arith.constant 0 : i32
    return %c0_i32, %c0_i32_0 : i32, i32
  }
  func.func @transform_3(%arg0: i32) -> (i32, i32) {
    %c0_i32 = arith.constant 0 : i32
    %c0_i32_0 = arith.constant 0 : i32
    %c0_i32_1 = arith.constant 0 : i32
    return %c0_i32, %c0_i32_0 : i32, i32
  }
  func.func @transform_4(%arg0: i32) -> (i32, i32, i32) {
    %c0_i32 = arith.constant 0 : i32
    %c0_i32_0 = arith.constant 0 : i32
    %c0_i32_1 = arith.constant 0 : i32
    %c0_i32_2 = arith.constant 0 : i32
    return %c0_i32, %c0_i32_0, %c0_i32_1 : i32, i32, i32
  }
  func.func @transform_5(%arg0: i32) -> (i32, i32, i32) {
    %c0_i32 = arith.constant 0 : i32
    %c0_i32_0 = arith.constant 0 : i32
    %c0_i32_1 = arith.constant 0 : i32
    return %arg0, %c0_i32, %c0_i32_0 : i32, i32, i32
  }
}

</mosaic_0001>

<llo_original>
// kernel: tpu_custom_call.1
$region0: #{tpu_custom_call.1}
  #allocation0 [shape = 'u32[]', space=smem, size = 0x4, offset = 0x4, fixed_abs, tag = 'smem constant byte address 0x4 - core index']
  #allocation1 [shape = 'u32[72,128]{1,0:T(1,128)}', space=vmem, size = 0x9000, scoped, tag = 'internal scratch']
  %s0 = inlined_call_operand.hbm [shape: f32[2,4,256], index: 0, kind: input, shape index: {}]
  %s1 = inlined_call_operand.vmem [shape: f32[16,4], index: 1, kind: input, shape index: {}]
  %s2 = inlined_call_operand.hbm [shape: f32[4,8], index: 2, kind: input, shape index: {}]
  %s3 = inlined_call_operand.vmem [shape: f32[4,1], index: 3, kind: input, shape index: {}]
  %s4 = inlined_call_operand.vmem [shape: f32[9,1,256], index: 4, kind: input, shape index: {}]
  %s5 = inlined_call_operand.hbm [shape: f32[2,4,256], index: 5, kind: output, shape index: {}]
  %s6 = sld [smem:[#allocation0]]
  $region61: #{tpu_custom_call.1} parent=0
    _
  %s8 = ssub.s32 1, %s6
  %s9 = scalar_select 0, %s8, %s6
  $region1: #{tpu_custom_call.1} parent=0
    #allocation2 [shape = 'u8[8192]{0}', space=vmem, size = 0x2000, scoped, tag = 'input window, operand 0']
    #allocation3 [shape = 's32[2]{0}', space=sflag, size = 0x8, scoped, tag = 'scoped memory for tpu_custom_call.1']
    #allocation4 [shape = 's32[2]{0}', space=sflag, size = 0x8, scoped, tag = 'scoped memory for tpu_custom_call.1']
    #allocation5 [shape = 'u8[2048]{0}', space=vmem, size = 0x800, scoped, tag = 'input window, operand 2, single buffered']
    #allocation6 [shape = 's32[1]{0}', space=sflag, size = 0x4, scoped, tag = 'scoped memory for tpu_custom_call.1']
    #allocation7 [shape = 'u8[8192]{0}', space=vmem, size = 0x2000, scoped, tag = 'output window, operand 0']
    %10 = vsyncpa [#allocation3], 0
    %s11 = scalar_lea.sflag [#allocation3], 1
    %12 = vsyncpa %s11, 0
    %13 = vsyncpa [#allocation6], 0
    %14 = vsyncpa [#allocation4], 0
    %s15 = scalar_lea.sflag [#allocation4], 1
    %16 = vsyncpa %s15, 0
    loop: start=0, step=1, limit=4
    $region2: #{tpu_custom_call.1} parent=1 // loop_pre_header
      _
    $region3: #{tpu_custom_call.1} parent=1 // loop_header
      %s18 = sphi 0, %s22
      %p19 = scmp.ge.s32.totalorder %s18, 4
      %s28 = sphi 0, %s30
      %s31 = sphi 0, %s28
      %s32 = sphi 0, %s31
      %s48 = sphi 0, %s32
      %s52 = sphi 0, %s52
      %s54 = sphi 0, %s52
      %s55 = sphi 0, %s54
      %s69 = sphi 0, %s55
      %s73 = sphi 0, %s73
      %s75 = sphi 0, %s73
      %s76 = sphi 0, %s75
      %s90 = sphi 0, %s76
      %s94 = sphi 0, %s94
      %s96 = sphi 0, %s94
      %s97 = sphi 0, %s96
      %s111 = sphi 0, %s97
      %s115 = sphi 0, %s115
      %s117 = sphi 0, %s115
      %s118 = sphi 0, %s117
      %s132 = sphi 0, %s118
      %s138 = sphi 0, %s140
      %s141 = sphi 0, %s138
      %s142 = sphi 0, %s141
      %s158 = sphi 0, %s142
    $region4: #{tpu_custom_call.1} parent=1 // loop_header_branch
      %21 = sbr.rel (%p19) target = $region8
    $region5: #{tpu_custom_call.1} parent=1 // loop_body
      %s23 = ssub.s32 %s18, 1
      %s24 = ssub.s32 %s18, 2
      %s25 = sadd.s32 %s18, 1
      %s26 = ssub.s32 %s18, %s25
      %p27 = scmp.eq.s32.totalorder %s26, 0
      %s29 = sadd.s32 %s28, 1
      %s30 = scalar_select %p27, %s28, %s29
      %p33 = pneg %p27
      %p34 = scmp.eq.s32.totalorder %s18, 1
      %p35 = por %p33, %p34
      %p36 = scmp.ne.s32.totalorder %s28, %s31
      %p37 = scmp.eq.s32.totalorder %s18, 0
      %p38 = por %p36, %p37
      %p39 = scmp.ne.s32.totalorder %s28, %s31
      %p40 = scmp.eq.s32.totalorder %s23, 1
      %p41 = por %p39, %p40
      %p42 = scmp.ne.s32.totalorder %s31, %s32
      %p43 = scmp.eq.s32.totalorder %s23, 0
      %p44 = por %p42, %p43
      %p45 = scmp.ne.s32.totalorder %s31, %s32
      %p46 = scmp.eq.s32.totalorder %s24, 1
      %p47 = por %p45, %p46
      %p49 = scmp.ne.s32.totalorder %s32, %s48
      %p50 = scmp.eq.s32.totalorder %s24, 0
      %p51 = por %p49, %p50
      %s53 = sadd.s32 %s52, 1
      %p56 = scmp.eq.s32.totalorder %s18, 1
      %p57 = scmp.ne.s32.totalorder %s52, %s54
      %p58 = scmp.eq.s32.totalorder %s18, 0
      %p59 = por %p57, %p58
      %p60 = scmp.ne.s32.totalorder %s52, %s54
      %p61 = scmp.eq.s32.totalorder %s23, 1
      %p62 = por %p60, %p61
      %p63 = scmp.ne.s32.totalorder %s54, %s55
      %p64 = scmp.eq.s32.totalorder %s23, 0
      %p65 = por %p63, %p64
      %p66 = scmp.ne.s32.totalorder %s54, %s55
      %p67 = scmp.eq.s32.totalorder %s24, 1
      %p68 = por %p66, %p67
      %p70 = scmp.ne.s32.totalorder %s55, %s69
      %p71 = scmp.eq.s32.totalorder %s24, 0
      %p72 = por %p70, %p71
      %s74 = sadd.s32 %s73, 1
      %p77 = scmp.eq.s32.totalorder %s18, 1
      %p78 = scmp.ne.s32.totalorder %s73, %s75
      %p79 = scmp.eq.s32.totalorder %s18, 0
      %p80 = por %p78, %p79
      %p81 = scmp.ne.s32.totalorder %s73, %s75
      %p82 = scmp.eq.s32.totalorder %s23, 1
      %p83 = por %p81, %p82
      %p84 = scmp.ne.s32.totalorder %s75, %s76
      %p85 = scmp.eq.s32.totalorder %s23, 0
      %p86 = por %p84, %p85
      %p87 = scmp.ne.s32.totalorder %s75, %s76
      %p88 = scmp.eq.s32.totalorder %s24, 1
      %p89 = por %p87, %p88
      %p91 = scmp.ne.s32.totalorder %s76, %s90
      %p92 = scmp.eq.s32.totalorder %s24, 0
      %p93 = por %p91, %p92
      %s95 = sadd.s32 %s94, 1
      %p98 = scmp.eq.s32.totalorder %s18, 1
      %p99 = scmp.ne.s32.totalorder %s94, %s96
      %p100 = scmp.eq.s32.totalorder %s18, 0
      %p101 = por %p99, %p100
      %p102 = scmp.ne.s32.totalorder %s94, %s96
      %p103 = scmp.eq.s32.totalorder %s23, 1
      %p104 = por %p102, %p103
      %p105 = scmp.ne.s32.totalorder %s96, %s97
      %p106 = scmp.eq.s32.totalorder %s23, 0
      %p107 = por %p105, %p106
      %p108 = scmp.ne.s32.totalorder %s96, %s97
      %p109 = scmp.eq.s32.totalorder %s24, 1
      %p110 = por %p108, %p109
      %p112 = scmp.ne.s32.totalorder %s97, %s111
      %p113 = scmp.eq.s32.totalorder %s24, 0
      %p114 = por %p112, %p113
      %s116 = sadd.s32 %s115, 1
      %p119 = scmp.eq.s32.totalorder %s18, 1
      %p120 = scmp.ne.s32.totalorder %s115, %s117
      %p121 = scmp.eq.s32.totalorder %s18, 0
      %p122 = por %p120, %p121
      %p123 = scmp.ne.s32.totalorder %s115, %s117
      %p124 = scmp.eq.s32.totalorder %s23, 1
      %p125 = por %p123, %p124
      %p126 = scmp.ne.s32.totalorder %s117, %s118
      %p127 = scmp.eq.s32.totalorder %s23, 0
      %p128 = por %p126, %p127
      %p129 = scmp.ne.s32.totalorder %s117, %s118
      %p130 = scmp.eq.s32.totalorder %s24, 1
      %p131 = por %p129, %p130
      %p133 = scmp.ne.s32.totalorder %s118, %s132
      %p134 = scmp.eq.s32.totalorder %s24, 0
      %p135 = por %p133, %p134
      %s136 = ssub.s32 %s18, %s25
      %p137 = scmp.eq.s32.totalorder %s136, 0
      %s139 = sadd.s32 %s138, 1
      %s140 = scalar_select %p137, %s138, %s139
      %p143 = pneg %p137
      %p144 = scmp.eq.s32.totalorder %s18, 1
      %p145 = por %p143, %p144
      %p146 = scmp.ne.s32.totalorder %s138, %s141
      %p147 = scmp.eq.s32.totalorder %s18, 0
      %p148 = por %p146, %p147
      %p149 = scmp.ne.s32.totalorder %s138, %s141
      %p150 = scmp.eq.s32.totalorder %s23, 1
      %p151 = por %p149, %p150
      %p152 = scmp.ne.s32.totalorder %s141, %s142
      %p153 = scmp.eq.s32.totalorder %s23, 0
      %p154 = por %p152, %p153
      %p155 = scmp.ne.s32.totalorder %s141, %s142
      %p156 = scmp.eq.s32.totalorder %s24, 1
      %p157 = por %p155, %p156
      %p159 = scmp.ne.s32.totalorder %s142, %s158
      %p160 = scmp.eq.s32.totalorder %s24, 0
      %p161 = por %p159, %p160
      %p162 = scmp.le.s32.totalorder 1, %s18
      %p163 = scmp.lt.s32.totalorder %s18, 3
      %p164 = pnand %p162, %p163
      %p165 = pneg %p164
      // Predicated region
      $region9: #{tpu_custom_call.1} parent=5 // pred_check
        _
      $region10: #{tpu_custom_call.1} parent=5 // pred_check_branch
        %167 = sbr.rel (%p164) target = $region12
      $region11: #{tpu_custom_call.1} parent=5 // pred_region
        %s168 = ssub.s32 %s18, 1
        // Predicated region
        $region13: #{tpu_custom_call.1} parent=11 // pred_check
          %p169 = pneg %p65
        $region14: #{tpu_custom_call.1} parent=11 // pred_check_branch
          %171 = sbr.rel (%p169) target = $region16
        $region15: #{tpu_custom_call.1} parent=11 // pred_region
          _
        $region16: #{tpu_custom_call.1} parent=11 // pred_fallthru
          _
        // Predicated region
        $region17: #{tpu_custom_call.1} parent=11 // pred_check
          %p172 = pneg %p86
        $region18: #{tpu_custom_call.1} parent=11 // pred_check_branch
          %174 = sbr.rel (%p172) target = $region20
        $region19: #{tpu_custom_call.1} parent=11 // pred_region
          %176 = vsyncadd [#allocation6], 0
          %s178 = sshll.u32 %s2, 4
          %s179 = int_to_ptr.hbm [resolvable:$true] %s178
          %s180 = sshll.u32 [#allocation5], 4
          %s181 = int_to_ptr.vmem [resolvable:$true] %s180
          %183 = dma.hbm_to_vmem [thread:$0]  %s179, 64, %s181, [#allocation6]
        $region20: #{tpu_custom_call.1} parent=11 // pred_fallthru
          _
        // Predicated region
        $region21: #{tpu_custom_call.1} parent=11 // pred_check
          %p184 = pneg %p107
        $region22: #{tpu_custom_call.1} parent=11 // pred_check_branch
          %186 = sbr.rel (%p184) target = $region24
        $region23: #{tpu_custom_call.1} parent=11 // pred_region
          _
        $region24: #{tpu_custom_call.1} parent=11 // pred_fallthru
          _
        // Predicated region
        $region25: #{tpu_custom_call.1} parent=11 // pred_check
          %p187 = pneg %p128
        $region26: #{tpu_custom_call.1} parent=11 // pred_check_branch
          %189 = sbr.rel (%p187) target = $region28
        $region27: #{tpu_custom_call.1} parent=11 // pred_region
          _
        $region28: #{tpu_custom_call.1} parent=11 // pred_fallthru
          _
      $region12: #{tpu_custom_call.1} parent=5 // pred_fallthru
        _
      %p190 = scmp.lt.s32.totalorder %s18, 2
      // Predicated region
      $region29: #{tpu_custom_call.1} parent=5 // pred_check
        %p191 = pneg %p190
      $region30: #{tpu_custom_call.1} parent=5 // pred_check_branch
        %193 = sbr.rel (%p191) target = $region32
      $region31: #{tpu_custom_call.1} parent=5 // pred_region
        // Predicated region
        $region33: #{tpu_custom_call.1} parent=31 // pred_check
          %p194 = pneg %p38
        $region34: #{tpu_custom_call.1} parent=31 // pred_check_branch
          %196 = sbr.rel (%p194) target = $region36
        $region35: #{tpu_custom_call.1} parent=31 // pred_region
          %s197 = sand.u32 %s28, 1
          %s198 = scalar_lea.sflag [#allocation3], %s197
          %s199 = sand.u32 %s28, 1
          %s200 = smul.addr %s199, 8
          %s201 = scalar_lea.vmem [#allocation2], %s200
          %203 = vsyncadd %s198, 0
          %s204 = smul.addr %s18, 2
          %s205 = smul.addr %s204, 4
          %s206 = scalar_lea.hbm %s0, %s205
          %s208 = sshll.u32 %s206, 4
          %s209 = int_to_ptr.hbm [resolvable:$true] %s208
          %s210 = sshll.u32 %s201, 4
          %s211 = int_to_ptr.vmem [resolvable:$true] %s210
          %213 = dma.hbm_to_vmem [thread:$0]  %s209, 128, %s211, %s198
        $region36: #{tpu_custom_call.1} parent=31 // pred_fallthru
          _
      $region32: #{tpu_custom_call.1} parent=5 // pred_fallthru
        _
      %p214 = scmp.le.s32.totalorder 1, %s18
      %p215 = scmp.lt.s32.totalorder %s18, 3
      %p216 = pnand %p214, %p215
      %p217 = pneg %p216
      // Predicated region
      $region37: #{tpu_custom_call.1} parent=5 // pred_check
        _
      $region38: #{tpu_custom_call.1} parent=5 // pred_check_branch
        %219 = sbr.rel (%p216) target = $region40
      $region39: #{tpu_custom_call.1} parent=5 // pred_region
        %s220 = ssub.s32 %s18, 1
        %s221 = sand.u32 %s31, 1
        %s222 = scalar_lea.sflag [#allocation3], %s221
        %s223 = sand.u32 %s31, 1
        %s224 = smul.addr %s223, 8
        %s225 = scalar_lea.vmem [#allocation2], %s224
        // Predicated region
        $region41: #{tpu_custom_call.1} parent=39 // pred_check
          %p226 = pneg %p44
        $region42: #{tpu_custom_call.1} parent=39 // pred_check_branch
          %228 = sbr.rel (%p226) target = $region44
        $region43: #{tpu_custom_call.1} parent=39 // pred_region
          %230 = dma.done %s222, 128
        $region44: #{tpu_custom_call.1} parent=39 // pred_fallthru
          _
        // Predicated region
        $region45: #{tpu_custom_call.1} parent=39 // pred_check
          %p231 = pneg %p86
        $region46: #{tpu_custom_call.1} parent=39 // pred_check_branch
          %233 = sbr.rel (%p231) target = $region48
        $region47: #{tpu_custom_call.1} parent=39 // pred_region
          %235 = dma.done [#allocation6], 64
        $region48: #{tpu_custom_call.1} parent=39 // pred_fallthru
          _
        %s236 = sand.u32 %s31, 1
        %s237 = scalar_lea.sflag [#allocation3], %s236
        %s238 = sand.u32 %s31, 1
        %s239 = smul.addr %s238, 8
        %s240 = scalar_lea.vmem [#allocation2], %s239
        %p241 = pneg %p44
        %p242 = pneg %p41
        %p243 = pneg %p65
        %p244 = pneg %p62
        %p245 = pneg %p86
        %p246 = pneg %p83
        %p247 = pneg %p107
        %p248 = pneg %p104
        %p249 = pneg %p128
        %p250 = pneg %p125
        %p251 = pneg %p154
        %p252 = pneg %p151
        %s253 = sand.u32 %s141, 1
        %s254 = scalar_lea.sflag [#allocation4], %s253
        %s255 = sand.u32 %s141, 1
        %s256 = smul.addr %s255, 8
        %s257 = scalar_lea.vmem [#allocation7], %s256
        %v258 = vld [vmem:[%s225] sm:$0xff]
        %v259 = vld [vmem:[%s1] sm:$0xff]
        %v260 = vld [vmem:[%s1 + $0x8] sm:$0xff]
        %262 = vst [vmem:[#allocation1] ss:$2 sm:$0xff] %v258
        %v263 = vld.sshfl [vmem:[#allocation1] sm:$0xff pattern:$0x75316420]
        %v264 = vld.sshfl [vmem:[#allocation1 + $0x8] sm:$0xff pattern:$0x75316420]
        %vm265 = vcmask 31744
        %v267 = vsel %vm265, %v259, 0
        %v270 = vsel %vm265, %v260, 0
        %vm272 = vcmask 1043456
        %v273 = vsel %vm272, %v263, 0
        %v275 = vsel %vm272, %v264, 0
        %277 = vmatpush.msra.mxu0 0.0
        %278 = vmatpush.msra.mxu0 0.0
        %279 = vmatpush.msra.mxu0 0.0
        %280 = vmatpush.msra.mxu0 0.0
        %281 = vmatpush.msra.mxu0 0.0
        %282 = vmatpush.msra.mxu0 0.0
        %283 = vmatpush.msra.mxu0 0.0
        %284 = vmatpush.msra.mxu0 0.0
        %285 = vmatpush.msra.mxu0 0.0
        %286 = vmatpush.msra.mxu0 0.0
        %287 = vmatpush.msra.mxu0 0.0
        %288 = vmatpush.msra.mxu0 0.0
        %289 = vmatpush.msra.mxu0 0.0
        %290 = vmatpush.msra.mxu0 0.0
        %291 = vmatpush.msra.mxu0 0.0
        %292 = vmatpush.msra.mxu0 %v273
        %293 = vmatmul.f32.gmra.mxu0 %v267
        %v294 = vpop.f32.mrf.mxu0
        %v295 = vadd.f32 0.0, %v294
        %296 = vmatmul.f32.gmra.mxu0 %v270
        %v297 = vpop.f32.mrf.mxu0
        %v298 = vadd.f32 0.0, %v297
        %299 = vdwg.mxu0
        %300 = vmatpush.msra.mxu0 0.0
        %301 = vmatpush.msra.mxu0 0.0
        %302 = vmatpush.msra.mxu0 0.0
        %303 = vmatpush.msra.mxu0 0.0
        %304 = vmatpush.msra.mxu0 0.0
        %305 = vmatpush.msra.mxu0 0.0
        %306 = vmatpush.msra.mxu0 0.0
        %307 = vmatpush.msra.mxu0 0.0
        %308 = vmatpush.msra.mxu0 0.0
        %309 = vmatpush.msra.mxu0 0.0
        %310 = vmatpush.msra.mxu0 0.0
        %311 = vmatpush.msra.mxu0 0.0
        %312 = vmatpush.msra.mxu0 0.0
        %313 = vmatpush.msra.mxu0 0.0
        %314 = vmatpush.msra.mxu0 0.0
        %315 = vmatpush.msra.mxu0 %v275
        %316 = vmatmul.f32.gmra.mxu0 %v267
        %v317 = vpop.f32.mrf.mxu0
        %v318 = vadd.f32 0.0, %v317
        %319 = vmatmul.f32.gmra.mxu0 %v270
        %v320 = vpop.f32.mrf.mxu0
        %v321 = vadd.f32 0.0, %v320
        %322 = vdwg.mxu0
        %323 = vrot.lane.b32.xlu0 %v298, 111
        %v324 = vpop.permute.xlu0 %323
        %325 = vrot.lane.b32.xlu0 %v321, 111
        %v326 = vpop.permute.xlu0 %325
        %v327 = vlaneseq
        %v328 = vand.u32 %v327, 127
        %vm329 = vcmp.lt.s32.totalorder %v328, 111
        %v330 = vsel %vm329, %v324, %v326
        %v331 = vsel %vm329, %v326, %v324
        %v332 = vmul.f32 %v295, %v330
        %v333 = vmul.f32 %v318, %v331
        %v334 = vrot.slane %v332, 4
        %v335 = vadd.f32 %v332, %v334
        %v336 = vrot.slane %v335, 2
        %v337 = vadd.f32 %v335, %v336
        %v338 = vrot.slane %v337, 1
        %v339 = vadd.f32 %v337, %v338
        %v340 = vrot.slane %v333, 4
        %v341 = vadd.f32 %v333, %v340
        %v342 = vrot.slane %v341, 2
        %v343 = vadd.f32 %v341, %v342
        %v344 = vrot.slane %v343, 1
        %v345 = vadd.f32 %v343, %v344
        %v346 = vld [vmem:[%s4] sm:$0x3]
        %v348 = vperm.slane %v346, 0
        %v349 = vperm.slane %v346, 1
        %v352 = vmul.f32 %v339, %v348
        %v353 = vmul.f32 %v345, %v349
        %354 = vrot.lane.b32.xlu0 %v298, 112
        %v355 = vpop.permute.xlu0 %354
        %356 = vrot.lane.b32.xlu0 %v321, 112
        %v357 = vpop.permute.xlu0 %356
        %vm358 = vcmp.lt.s32.totalorder %v328, 112
        %v359 = vsel %vm358, %v355, %v357
        %v360 = vsel %vm358, %v357, %v355
        %v361 = vmul.f32 %v295, %v359
        %v362 = vmul.f32 %v318, %v360
        %v363 = vrot.slane %v361, 4
        %v364 = vadd.f32 %v361, %v363
        %v365 = vrot.slane %v364, 2
        %v366 = vadd.f32 %v364, %v365
        %v367 = vrot.slane %v366, 1
        %v368 = vadd.f32 %v366, %v367
        %v369 = vrot.slane %v362, 4
        %v370 = vadd.f32 %v362, %v369
        %v371 = vrot.slane %v370, 2
        %v372 = vadd.f32 %v370, %v371
        %v373 = vrot.slane %v372, 1
        %v374 = vadd.f32 %v372, %v373
        %s375 = scalar_lea.vmem %s4, 2
        %v376 = vld [vmem:[%s375] sm:$0x3]
        %v378 = vperm.slane %v376, 0
        %v379 = vperm.slane %v376, 1
        %v382 = vmul.f32 %v368, %v378
        %v383 = vmul.f32 %v374, %v379
        %384 = vrot.lane.b32.xlu0 %v298, 113
        %v385 = vpop.permute.xlu0 %384
        %386 = vrot.lane.b32.xlu0 %v321, 113
        %v387 = vpop.permute.xlu0 %386
        %vm388 = vcmp.lt.s32.totalorder %v328, 113
        %v389 = vsel %vm388, %v385, %v387
        %v390 = vsel %vm388, %v387, %v385
        %v391 = vmul.f32 %v295, %v389
        %v392 = vmul.f32 %v318, %v390
        %v393 = vrot.slane %v391, 4
        %v394 = vadd.f32 %v391, %v393
        %v395 = vrot.slane %v394, 2
        %v396 = vadd.f32 %v394, %v395
        %v397 = vrot.slane %v396, 1
        %v398 = vadd.f32 %v396, %v397
        %v399 = vrot.slane %v392, 4
        %v400 = vadd.f32 %v392, %v399
        %v401 = vrot.slane %v400, 2
        %v402 = vadd.f32 %v400, %v401
        %v403 = vrot.slane %v402, 1
        %v404 = vadd.f32 %v402, %v403
        %s405 = scalar_lea.vmem %s4, 4
        %v406 = vld [vmem:[%s405] sm:$0x3]
        %v408 = vperm.slane %v406, 0
        %v409 = vperm.slane %v406, 1
        %v412 = vmul.f32 %v398, %v408
        %v413 = vmul.f32 %v404, %v409
        %414 = vrot.lane.b32.xlu0 %v298, 127
        %v415 = vpop.permute.xlu0 %414
        %416 = vrot.lane.b32.xlu0 %v321, 127
        %v417 = vpop.permute.xlu0 %416
        %vm418 = vcmp.lt.s32.totalorder %v328, 127
        %v419 = vsel %vm418, %v415, %v417
        %v420 = vsel %vm418, %v417, %v415
        %v421 = vmul.f32 %v295, %v419
        %v422 = vmul.f32 %v318, %v420
        %v423 = vrot.slane %v421, 4
        %v424 = vadd.f32 %v421, %v423
        %v425 = vrot.slane %v424, 2
        %v426 = vadd.f32 %v424, %v425
        %v427 = vrot.slane %v426, 1
        %v428 = vadd.f32 %v426, %v427
        %v429 = vrot.slane %v422, 4
        %v430 = vadd.f32 %v422, %v429
        %v431 = vrot.slane %v430, 2
        %v432 = vadd.f32 %v430, %v431
        %v433 = vrot.slane %v432, 1
        %v434 = vadd.f32 %v432, %v433
        %s435 = scalar_lea.vmem %s4, 6
        %v436 = vld [vmem:[%s435] sm:$0x3]
        %v438 = vperm.slane %v436, 0
        %v439 = vperm.slane %v436, 1
        %v442 = vmul.f32 %v428, %v438
        %v443 = vmul.f32 %v434, %v439
        %v444 = vmul.f32 %v295, %v298
        %v445 = vmul.f32 %v318, %v321
        %v446 = vrot.slane %v444, 4
        %v447 = vadd.f32 %v444, %v446
        %v448 = vrot.slane %v447, 2
        %v449 = vadd.f32 %v447, %v448
        %v450 = vrot.slane %v449, 1
        %v451 = vadd.f32 %v449, %v450
        %v452 = vrot.slane %v445, 4
        %v453 = vadd.f32 %v445, %v452
        %v454 = vrot.slane %v453, 2
        %v455 = vadd.f32 %v453, %v454
        %v456 = vrot.slane %v455, 1
        %v457 = vadd.f32 %v455, %v456
        %s458 = scalar_lea.vmem %s4, 8
        %v459 = vld [vmem:[%s458] sm:$0x3]
        %v461 = vperm.slane %v459, 0
        %v462 = vperm.slane %v459, 1
        %v465 = vmul.f32 %v451, %v461
        %v466 = vmul.f32 %v457, %v462
        %467 = vrot.lane.b32.xlu0 %v298, 1
        %v468 = vpop.permute.xlu0 %467
        %469 = vrot.lane.b32.xlu0 %v321, 1
        %v470 = vpop.permute.xlu0 %469
        %vm471 = vcmp.lt.s32.totalorder %v328, 1
        %v472 = vsel %vm471, %v468, %v470
        %v473 = vsel %vm471, %v470, %v468
        %v474 = vmul.f32 %v295, %v473
        %v475 = vmul.f32 %v318, %v472
        %v476 = vrot.slane %v474, 4
        %v477 = vadd.f32 %v474, %v476
        %v478 = vrot.slane %v477, 2
        %v479 = vadd.f32 %v477, %v478
        %v480 = vrot.slane %v479, 1
        %v481 = vadd.f32 %v479, %v480
        %v482 = vrot.slane %v475, 4
        %v483 = vadd.f32 %v475, %v482
        %v484 = vrot.slane %v483, 2
        %v485 = vadd.f32 %v483, %v484
        %v486 = vrot.slane %v485, 1
        %v487 = vadd.f32 %v485, %v486
        %s488 = scalar_lea.vmem %s4, 10
        %v489 = vld [vmem:[%s488] sm:$0x3]
        %v491 = vperm.slane %v489, 0
        %v492 = vperm.slane %v489, 1
        %v495 = vmul.f32 %v481, %v491
        %v496 = vmul.f32 %v487, %v492
        %497 = vrot.lane.b32.xlu0 %v298, 15
        %v498 = vpop.permute.xlu0 %497
        %499 = vrot.lane.b32.xlu0 %v321, 15
        %v500 = vpop.permute.xlu0 %499
        %vm501 = vcmp.lt.s32.totalorder %v328, 15
        %v502 = vsel %vm501, %v498, %v500
        %v503 = vsel %vm501, %v500, %v498
        %v504 = vmul.f32 %v295, %v503
        %v505 = vmul.f32 %v318, %v502
        %v506 = vrot.slane %v504, 4
        %v507 = vadd.f32 %v504, %v506
        %v508 = vrot.slane %v507, 2
        %v509 = vadd.f32 %v507, %v508
        %v510 = vrot.slane %v509, 1
        %v511 = vadd.f32 %v509, %v510
        %v512 = vrot.slane %v505, 4
        %v513 = vadd.f32 %v505, %v512
        %v514 = vrot.slane %v513, 2
        %v515 = vadd.f32 %v513, %v514
        %v516 = vrot.slane %v515, 1
        %v517 = vadd.f32 %v515, %v516
        %s518 = scalar_lea.vmem %s4, 12
        %v519 = vld [vmem:[%s518] sm:$0x3]
        %v521 = vperm.slane %v519, 0
        %v522 = vperm.slane %v519, 1
        %v525 = vmul.f32 %v511, %v521
        %v526 = vmul.f32 %v517, %v522
        %527 = vrot.lane.b32.xlu0 %v298, 16
        %v528 = vpop.permute.xlu0 %527
        %529 = vrot.lane.b32.xlu0 %v321, 16
        %v530 = vpop.permute.xlu0 %529
        %vm531 = vcmp.lt.s32.totalorder %v328, 16
        %v532 = vsel %vm531, %v528, %v530
        %v533 = vsel %vm531, %v530, %v528
        %v534 = vmul.f32 %v295, %v533
        %v535 = vmul.f32 %v318, %v532
        %v536 = vrot.slane %v534, 4
        %v537 = vadd.f32 %v534, %v536
        %v538 = vrot.slane %v537, 2
        %v539 = vadd.f32 %v537, %v538
        %v540 = vrot.slane %v539, 1
        %v541 = vadd.f32 %v539, %v540
        %v542 = vrot.slane %v535, 4
        %v543 = vadd.f32 %v535, %v542
        %v544 = vrot.slane %v543, 2
        %v545 = vadd.f32 %v543, %v544
        %v546 = vrot.slane %v545, 1
        %v547 = vadd.f32 %v545, %v546
        %s548 = scalar_lea.vmem %s4, 14
        %v549 = vld [vmem:[%s548] sm:$0x3]
        %v551 = vperm.slane %v549, 0
        %v552 = vperm.slane %v549, 1
        %v555 = vmul.f32 %v541, %v551
        %v556 = vmul.f32 %v547, %v552
        %557 = vrot.lane.b32.xlu0 %v298, 17
        %v558 = vpop.permute.xlu0 %557
        %559 = vrot.lane.b32.xlu0 %v321, 17
        %v560 = vpop.permute.xlu0 %559
        %vm561 = vcmp.lt.s32.totalorder %v328, 17
        %v562 = vsel %vm561, %v558, %v560
        %v563 = vsel %vm561, %v560, %v558
        %v564 = vmul.f32 %v295, %v563
        %v565 = vmul.f32 %v318, %v562
        %v566 = vrot.slane %v564, 4
        %v567 = vadd.f32 %v564, %v566
        %v568 = vrot.slane %v567, 2
        %v569 = vadd.f32 %v567, %v568
        %v570 = vrot.slane %v569, 1
        %v571 = vadd.f32 %v569, %v570
        %v572 = vrot.slane %v565, 4
        %v573 = vadd.f32 %v565, %v572
        %v574 = vrot.slane %v573, 2
        %v575 = vadd.f32 %v573, %v574
        %v576 = vrot.slane %v575, 1
        %v577 = vadd.f32 %v575, %v576
        %s578 = scalar_lea.vmem %s4, 16
        %v579 = vld [vmem:[%s578] sm:$0x3]
        %v581 = vperm.slane %v579, 0
        %v582 = vperm.slane %v579, 1
        %v585 = vmul.f32 %v571, %v581
        %v586 = vmul.f32 %v577, %v582
        %v587 = vmax.f32 %v352, %v382
        %v588 = vmax.f32 %v353, %v383
        %v589 = vmax.f32 %v587, %v412
        %v590 = vmax.f32 %v588, %v413
        %v591 = vmax.f32 %v589, %v442
        %v592 = vmax.f32 %v590, %v443
        %v593 = vmax.f32 %v591, %v465
        %v594 = vmax.f32 %v592, %v466
        %v595 = vmax.f32 %v593, %v495
        %v596 = vmax.f32 %v594, %v496
        %v597 = vmax.f32 %v595, %v525
        %v598 = vmax.f32 %v596, %v526
        %v599 = vmax.f32 %v597, %v555
        %v600 = vmax.f32 %v598, %v556
        %v601 = vmax.f32 %v599, %v585
        %v602 = vmax.f32 %v600, %v586
        %v603 = vsub.f32 %v352, %v601
        %v604 = vsub.f32 %v353, %v602
        %v605 = vmul.f32 %v603, 1.442695
        %v606 = vpow.pop %v605
        %v607 = vmul.f32 %v604, 1.442695
        %v608 = vpow.pop %v607
        %v609 = vadd.f32 %v606, 0.0
        %v610 = vadd.f32 %v608, 0.0
        %v611 = vmul.f32 %v606, %v348
        %v612 = vmul.f32 %v608, %v349
        %v613 = vperm.slane %v611, 0
        %v614 = vperm.slane %v612, 0
        %v615 = vmul.f32 %v613, %v330
        %v616 = vmul.f32 %v614, %v331
        %v617 = vadd.f32 %v615, 0.0
        %v618 = vadd.f32 %v616, 0.0
        %v619 = vsub.f32 %v382, %v601
        %v620 = vsub.f32 %v383, %v602
        %v621 = vmul.f32 %v619, 1.442695
        %v622 = vpow.pop %v621
        %v623 = vmul.f32 %v620, 1.442695
        %v624 = vpow.pop %v623
        %v625 = vadd.f32 %v609, %v622
        %v626 = vadd.f32 %v610, %v624
        %v627 = vmul.f32 %v622, %v378
        %v628 = vmul.f32 %v624, %v379
        %v629 = vperm.slane %v627, 0
        %v630 = vperm.slane %v628, 0
        %v631 = vmul.f32 %v629, %v359
        %v632 = vmul.f32 %v630, %v360
        %v633 = vadd.f32 %v617, %v631
        %v634 = vadd.f32 %v618, %v632
        %v635 = vsub.f32 %v412, %v601
        %v636 = vsub.f32 %v413, %v602
        %v637 = vmul.f32 %v635, 1.442695
        %v638 = vpow.pop %v637
        %v639 = vmul.f32 %v636, 1.442695
        %v640 = vpow.pop %v639
        %v641 = vadd.f32 %v625, %v638
        %v642 = vadd.f32 %v626, %v640
        %v643 = vmul.f32 %v638, %v408
        %v644 = vmul.f32 %v640, %v409
        %v645 = vperm.slane %v643, 0
        %v646 = vperm.slane %v644, 0
        %v647 = vmul.f32 %v645, %v389
        %v648 = vmul.f32 %v646, %v390
        %v649 = vadd.f32 %v633, %v647
        %v650 = vadd.f32 %v634, %v648
        %v651 = vsub.f32 %v442, %v601
        %v652 = vsub.f32 %v443, %v602
        %v653 = vmul.f32 %v651, 1.442695
        %v654 = vpow.pop %v653
        %v655 = vmul.f32 %v652, 1.442695
        %v656 = vpow.pop %v655
        %v657 = vadd.f32 %v641, %v654
        %v658 = vadd.f32 %v642, %v656
        %v659 = vmul.f32 %v654, %v438
        %v660 = vmul.f32 %v656, %v439
        %v661 = vperm.slane %v659, 0
        %v662 = vperm.slane %v660, 0
        %v663 = vmul.f32 %v661, %v419
        %v664 = vmul.f32 %v662, %v420
        %v665 = vadd.f32 %v649, %v663
        %v666 = vadd.f32 %v650, %v664
        %v667 = vsub.f32 %v465, %v601
        %v668 = vsub.f32 %v466, %v602
        %v669 = vmul.f32 %v667, 1.442695
        %v670 = vpow.pop %v669
        %v671 = vmul.f32 %v668, 1.442695
        %v672 = vpow.pop %v671
        %v673 = vadd.f32 %v657, %v670
        %v674 = vadd.f32 %v658, %v672
        %v675 = vmul.f32 %v670, %v461
        %v676 = vmul.f32 %v672, %v462
        %v677 = vperm.slane %v675, 0
        %v678 = vperm.slane %v676, 0
        %v679 = vmul.f32 %v677, %v298
        %v680 = vmul.f32 %v678, %v321
        %v681 = vadd.f32 %v665, %v679
        %v682 = vadd.f32 %v666, %v680
        %v683 = vsub.f32 %v495, %v601
        %v684 = vsub.f32 %v496, %v602
        %v685 = vmul.f32 %v683, 1.442695
        %v686 = vpow.pop %v685
        %v687 = vmul.f32 %v684, 1.442695
        %v688 = vpow.pop %v687
        %v689 = vadd.f32 %v673, %v686
        %v690 = vadd.f32 %v674, %v688
        %v691 = vmul.f32 %v686, %v491
        %v692 = vmul.f32 %v688, %v492
        %v693 = vperm.slane %v691, 0
        %v694 = vperm.slane %v692, 0
        %v695 = vmul.f32 %v693, %v473
        %v696 = vmul.f32 %v694, %v472
        %v697 = vadd.f32 %v681, %v695
        %v698 = vadd.f32 %v682, %v696
        %v699 = vsub.f32 %v525, %v601
        %v700 = vsub.f32 %v526, %v602
        %v701 = vmul.f32 %v699, 1.442695
        %v702 = vpow.pop %v701
        %v703 = vmul.f32 %v700, 1.442695
        %v704 = vpow.pop %v703
        %v705 = vadd.f32 %v689, %v702
        %v706 = vadd.f32 %v690, %v704
        %v707 = vmul.f32 %v702, %v521
        %v708 = vmul.f32 %v704, %v522
        %v709 = vperm.slane %v707, 0
        %v710 = vperm.slane %v708, 0
        %v711 = vmul.f32 %v709, %v503
        %v712 = vmul.f32 %v710, %v502
        %v713 = vadd.f32 %v697, %v711
        %v714 = vadd.f32 %v698, %v712
        %v715 = vsub.f32 %v555, %v601
        %v716 = vsub.f32 %v556, %v602
        %v717 = vmul.f32 %v715, 1.442695
        %v718 = vpow.pop %v717
        %v719 = vmul.f32 %v716, 1.442695
        %v720 = vpow.pop %v719
        %v721 = vadd.f32 %v705, %v718
        %v722 = vadd.f32 %v706, %v720
        %v723 = vmul.f32 %v718, %v551
        %v724 = vmul.f32 %v720, %v552
        %v725 = vperm.slane %v723, 0
        %v726 = vperm.slane %v724, 0
        %v727 = vmul.f32 %v725, %v533
        %v728 = vmul.f32 %v726, %v532
        %v729 = vadd.f32 %v713, %v727
        %v730 = vadd.f32 %v714, %v728
        %v731 = vsub.f32 %v585, %v601
        %v732 = vsub.f32 %v586, %v602
        %v733 = vmul.f32 %v731, 1.442695
        %v734 = vpow.pop %v733
        %v735 = vmul.f32 %v732, 1.442695
        %v736 = vpow.pop %v735
        %v737 = vadd.f32 %v721, %v734
        %v738 = vadd.f32 %v722, %v736
        %v739 = vmul.f32 %v734, %v581
        %v740 = vmul.f32 %v736, %v582
        %v741 = vperm.slane %v739, 0
        %v742 = vperm.slane %v740, 0
        %v743 = vmul.f32 %v741, %v563
        %v744 = vmul.f32 %v742, %v562
        %v745 = vadd.f32 %v729, %v743
        %v746 = vadd.f32 %v730, %v744
        %v747 = vrcp.pop %v737
        %v748 = vrcp.pop %v738
        %v749 = vperm.slane %v747, 0
        %v750 = vperm.slane %v748, 0
        %v751 = vmul.f32 %v745, %v749
        %v752 = vmul.f32 %v746, %v750
        %v753 = vld [vmem:[#allocation5] sm:$0xf]
        %v754 = vld [vmem:[%s3] sm:$0xf]
        %756 = vset.pattern.permute.xlu0 0
        %757 = vperm.xlu0 %756, %v754
        %v758 = vpop.permute.xlu0 %757
        %vm760 = vcmask 64512
        %v762 = vsel %vm760, %v753, 0
        %764 = vmatpush.msra.mxu0 0.0
        %765 = vmatpush.msra.mxu0 0.0
        %766 = vmatpush.msra.mxu0 0.0
        %767 = vmatpush.msra.mxu0 0.0
        %768 = vmatpush.msra.mxu0 0.0
        %769 = vmatpush.msra.mxu0 0.0
        %770 = vmatpush.msra.mxu0 0.0
        %771 = vmatpush.msra.mxu0 0.0
        %772 = vmatpush.msra.mxu0 0.0
        %773 = vmatpush.msra.mxu0 0.0
        %774 = vmatpush.msra.mxu0 0.0
        %775 = vmatpush.msra.mxu0 0.0
        %776 = vmatpush.msra.mxu0 0.0
        %777 = vmatpush.msra.mxu0 0.0
        %778 = vmatpush.msra.mxu0 0.0
        %779 = vmatpush.msra.mxu0 %v751
        %780 = vmatmul.f32.gmra.mxu0 %v762
        %v781 = vpop.f32.mrf.mxu0
        %v782 = vadd.f32 %v758, %v781
        %783 = vdwg.mxu0
        %784 = vmatpush.msra.mxu0 0.0
        %785 = vmatpush.msra.mxu0 0.0
        %786 = vmatpush.msra.mxu0 0.0
        %787 = vmatpush.msra.mxu0 0.0
        %788 = vmatpush.msra.mxu0 0.0
        %789 = vmatpush.msra.mxu0 0.0
        %790 = vmatpush.msra.mxu0 0.0
        %791 = vmatpush.msra.mxu0 0.0
        %792 = vmatpush.msra.mxu0 0.0
        %793 = vmatpush.msra.mxu0 0.0
        %794 = vmatpush.msra.mxu0 0.0
        %795 = vmatpush.msra.mxu0 0.0
        %796 = vmatpush.msra.mxu0 0.0
        %797 = vmatpush.msra.mxu0 0.0
        %798 = vmatpush.msra.mxu0 0.0
        %799 = vmatpush.msra.mxu0 %v752
        %800 = vmatmul.f32.gmra.mxu0 %v762
        %v801 = vpop.f32.mrf.mxu0
        %v802 = vadd.f32 %v758, %v801
        %803 = vdwg.mxu0
        %v806 = vrot.slane %v802, 4
        %v807 = vsel %vm272, %v782, %v806
        %809 = vst [vmem:[%s257] sm:$0xff] %v807
        %s810 = sand.u32 %s141, 1
        %s811 = scalar_lea.sflag [#allocation4], %s810
        %s812 = sand.u32 %s141, 1
        %s813 = smul.addr %s812, 8
        %s814 = scalar_lea.vmem [#allocation7], %s813
        // Predicated region
        $region49: #{tpu_custom_call.1} parent=39 // pred_check
          %p815 = pneg %p151
        $region50: #{tpu_custom_call.1} parent=39 // pred_check_branch
          %817 = sbr.rel (%p815) target = $region52
        $region51: #{tpu_custom_call.1} parent=39 // pred_region
          %819 = vsyncadd %s811, 0
          %s820 = smul.addr %s23, 2
          %s821 = smul.addr %s820, 4
          %s822 = scalar_lea.hbm %s5, %s821
          %s824 = sshll.u32 %s814, 4
          %s825 = int_to_ptr.vmem [resolvable:$true] %s824
          %s826 = sshll.u32 %s822, 4
          %s827 = int_to_ptr.hbm [resolvable:$true] %s826
          %829 = dma.vmem_to_hbm [thread:$0]  %s825, 128, %s827, %s811
        $region52: #{tpu_custom_call.1} parent=39 // pred_fallthru
          _
      $region40: #{tpu_custom_call.1} parent=5 // pred_fallthru
        _
      %p830 = scmp.le.s32.totalorder 2, %s18
      // Predicated region
      $region53: #{tpu_custom_call.1} parent=5 // pred_check
        %p831 = pneg %p830
      $region54: #{tpu_custom_call.1} parent=5 // pred_check_branch
        %833 = sbr.rel (%p831) target = $region56
      $region55: #{tpu_custom_call.1} parent=5 // pred_region
        %s834 = ssub.s32 %s18, 2
        // Predicated region
        $region57: #{tpu_custom_call.1} parent=55 // pred_check
          %p835 = pneg %p157
        $region58: #{tpu_custom_call.1} parent=55 // pred_check_branch
          %837 = sbr.rel (%p835) target = $region60
        $region59: #{tpu_custom_call.1} parent=55 // pred_region
          %s838 = sand.u32 %s142, 1
          %s839 = scalar_lea.sflag [#allocation4], %s838
          %s840 = sand.u32 %s142, 1
          %s841 = smul.addr %s840, 8
          %s842 = scalar_lea.vmem [#allocation7], %s841
          %844 = dma.done %s839, 128
        $region60: #{tpu_custom_call.1} parent=55 // pred_fallthru
          _
      $region56: #{tpu_custom_call.1} parent=5 // pred_fallthru
        _
    $region6: #{tpu_custom_call.1} parent=1 // loop_footer
      %s22 = sadd.s32 1, %s18
    $region7: #{tpu_custom_call.1} parent=1 // loop_footer_branch
      %17 = sbr.rel target = $region3
    $region8: #{tpu_custom_call.1} parent=1 // loop_exit
      _
    %845 = vsyncpa [#allocation3], 1
    %s846 = scalar_lea.sflag [#allocation3], 1
    %847 = vsyncpa %s846, 1
    %848 = vsyncpa [#allocation6], 1
    %849 = vsyncpa [#allocation4], 1
    %s850 = scalar_lea.sflag [#allocation4], 1
    %851 = vsyncpa %s850, 1

</llo_original>
